<compile_context>
chip_gen: v5e
topology: v5e:2x2
jax: 0.10.0
libtpu: 0.0.40
codegen_flags: <defaults>
</compile_context>

<pallas_src>
import functools

import jax
import jax.numpy as jnp
from jax import lax
from jax.experimental import pallas as pl
from jax.experimental.pallas import tpu as pltpu

IGNORE_LABEL = -1
SMOOTH = 1.0
EXPONENT = 2      # hard-wired below: pred**2, and onehot**2 == onehot
LANE = 128
NSPLIT = 2        # spatial split -> 2 resident accumulators (v7x: one per TC)


def _ceil_div(a, b):
    return -(-a // b)


def _round_up(a, b):
    return _ceil_div(a, b) * b


def _dice_kernel(score_ref, tgt_ref, num_ref, den_ref, *, half, rows_valid):
    """One (n, s, k) grid step.

    score_ref: (1, C, TR, 128)  network dtype (f32/bf16), upcast in-kernel
    tgt_ref:   (1, 1, TR, 128)  int8/int32 labels in {-1} U [0, C)
    num_ref:   (1, 1, C, 128)   f32 lane-parallel accumulator (resident over k)
    den_ref:   (1, 1, C, 128)   f32 lane-parallel accumulator (resident over k)
    """
    k = pl.program_id(2)
    C = score_ref.shape[1]
    TR = score_ref.shape[2]

    @pl.when(k == 0)
    def _():
        num_ref[...] = jnp.zeros_like(num_ref)
        den_ref[...] = jnp.zeros_like(den_ref)

    # Row mask: the logical spatial block (unclamped) may overrun the R axis.
    pk = pl.program_id(1) * half + k
    row0 = pk * TR
    rows = row0 + lax.broadcasted_iota(jnp.int32, (TR, LANE), 0)
    rb = rows < rows_valid                                     # (TR, 128) bool

    # One masked label slab handles ignore-label, lane padding AND row overrun.
    t = jnp.where(rb, tgt_ref[0, 0].astype(jnp.int32), IGNORE_LABEL)
    valid = (t != IGNORE_LABEL).astype(jnp.float32)

    # Pass 1: per-pixel channel max (only `m` stays live).
    m = score_ref[0, 0].astype(jnp.float32)
    for c in range(1, C):
        m = jnp.maximum(m, score_ref[0, c].astype(jnp.float32))

    # Pass 2: exp + softmax denominator (only the e[] slabs stay live).
    e = []
    denom = None
    for c in range(C):
        ec = jnp.exp(score_ref[0, c].astype(jnp.float32) - m)
        ec = jnp.where(rb, ec, 1.0)      # overrun rows hold garbage -> keep finite
        e.append(ec)
        denom = ec if denom is None else denom + ec
    inv = pl.reciprocal(denom, approx=True)                    # EUP slot
    inv2v = inv * inv * valid                                  # hoisted pred^2*valid factor

    # Pass 3: per-class lane-parallel partial sums (reduce over rows only; the
    # 128-lane reduce happens in the JAX glue).
    num_rows, den_rows = [], []
    for c in range(C):
        eq = t == c                      # == onehot(clamp(t)) * valid for labels in {-1} U [0, C)
        num_rows.append(
            jnp.sum(jnp.where(eq, e[c] * inv, 0.0), axis=0, keepdims=True))
        den_rows.append(
            jnp.sum(e[c] * e[c] * inv2v + eq.astype(jnp.float32),
                    axis=0, keepdims=True))
    num_ref[0, 0] += jnp.concatenate(num_rows, axis=0)         # (C, 128)
    den_ref[0, 0] += jnp.concatenate(den_rows, axis=0)         # (C, 128)


@functools.partial(jax.jit, static_argnames=("max_tile_rows",))
def dice_loss(score, target, *, max_tile_rows=512):
    """score: (N, C, H', W') float, target: (N, H, W) int.  Returns scalar loss."""
    N, C, ph, pw = score.shape
    h, w = target.shape[1], target.shape[2]
    if (ph, pw) != (h, w):
        # TODO(synk): fuse the bilinear upsample into the tiled kernel (DMA the
        # low-res window + halo per spatial tile) so the full-resolution score
        # is never materialized in HBM.
        score = jax.image.resize(score, (N, C, h, w), method="bilinear")

    P = h * w
    R = _ceil_div(P, LANE)                 # rows of 128 pixels
    lane_pad = R * LANE - P                # < 128, only if H*W % 128 != 0

    # int8 labels only when every block's row dim is a multiple of 32 (R >= 32
    # guarantees TR % 32 == 0 below); otherwise keep int32 (tiny inputs anyway).
    tgt_dtype = jnp.int8 if (R >= 32 and C <= 127) else jnp.int32
    score_flat = score.reshape(N, C, P)                        # keep network dtype (bf16 ok)
    target_flat = target.reshape(N, P).astype(tgt_dtype)
    if lane_pad:
        # Rare path (H*W not a multiple of 128): pads < 128 pixels per (n, c).
        # Padded labels are IGNORE, so they contribute exactly 0 to num and den.
        score_flat = jnp.pad(score_flat, ((0, 0), (0, 0), (0, lane_pad)))
        target_flat = jnp.pad(target_flat, ((0, 0), (0, lane_pad)),
                              constant_values=IGNORE_LABEL)
    score_k = score_flat.reshape(N, C, R, LANE)
    target_k = target_flat.reshape(N, 1, R, LANE)

    # Tile rows: budget VMEM (double-buffered inputs + f32 temporaries) and keep
    # TR a multiple of 32 so f32/bf16 score and int8 target tiles are all legal.
    dt_bytes = jnp.dtype(score.dtype).itemsize
    bytes_per_row = LANE * (2 * C * dt_bytes + 2 + (C + 6) * 4)
    vmem_budget = 12 * 1024 * 1024
    tr_cap = max(32, (vmem_budget // bytes_per_row) // 32 * 32)
    max_tile_rows = max(32, (int(max_tile_rows) // 32) * 32)
    TR = min(max_tile_rows, tr_cap, _round_up(_ceil_div(R, NSPLIT), 32))
    if TR >= R:
        TR = R                             # full-dim block: exempt from sublane tiling rule
    num_pk = _ceil_div(R, TR)              # spatial blocks actually covering data
    nsplit = NSPLIT if num_pk >= NSPLIT else 1
    half = _ceil_div(num_pk, nsplit)       # blocks per split
    last_blk = num_pk - 1

    def in_map(n, s, k):
        # Clamp so the (rare) fully-out-of-range block of an odd split re-reads
        # the last valid block; its contribution is zeroed by the in-kernel
        # row mask, so only a negligible duplicate DMA is wasted.
        return (n, 0, jnp.minimum(s * half + k, last_blk), 0)

    def out_map(n, s, k):
        return (n, s, 0, 0)

    kernel = functools.partial(_dice_kernel, half=half, rows_valid=R)

    flops = 12 * N * C * P                 # rough VPU op count (advisory)
    bytes_accessed = (score_k.size * dt_bytes + target_k.size *
                      jnp.dtype(tgt_dtype).itemsize +
                      2 * N * nsplit * C * LANE * 4)

    num_out, den_out = pl.pallas_call(
        kernel,
        out_shape=(jax.ShapeDtypeStruct((N, nsplit, C, LANE), jnp.float32),
                   jax.ShapeDtypeStruct((N, nsplit, C, LANE), jnp.float32)),
        grid_spec=pltpu.PrefetchScalarGridSpec(
            num_scalar_prefetch=0,
            grid=(N, nsplit, half),
            in_specs=[
                pl.BlockSpec((1, C, TR, LANE), in_map),
                pl.BlockSpec((1, 1, TR, LANE), in_map),
            ],
            out_specs=[
                pl.BlockSpec((1, 1, C, LANE), out_map),
                pl.BlockSpec((1, 1, C, LANE), out_map),
            ],
        ),
        compiler_params=pltpu.CompilerParams(
            dimension_semantics=("parallel", "parallel", "arbitrary"),
            vmem_limit_bytes=32 * 1024 * 1024),
        cost_estimate=pl.CostEstimate(flops=flops,
                                      transcendentals=N * C * P,
                                      bytes_accessed=bytes_accessed),
    )(score_k, target_k)

    num = jnp.sum(num_out, axis=(1, 3))                        # (N, C)
    den = jnp.sum(den_out, axis=(1, 3))                        # (N, C)
    dice = (2.0 * num + SMOOTH) / (den + max(SMOOTH, 1e-5))
    # ignore_index == -1, so every class i in [0, C) contributes.
    per_class_loss = 1.0 - jnp.mean(dice, axis=0)              # (C,)
    return jnp.sum(per_class_loss) / C


def _dice_loss_ref(score, target):
    """Pure-JAX reference mirroring the PyTorch DiceLoss module."""
    N, C = score.shape[0], score.shape[1]
    h, w = target.shape[1], target.shape[2]
    if score.shape[2:] != (h, w):
        score = jax.image.resize(score, (N, C, h, w), method="bilinear")
    pred = jax.nn.softmax(score.astype(jnp.float32), axis=1)      # (N, C, H, W)
    onehot = jax.nn.one_hot(jnp.clip(target, 0, C - 1), C)        # (N, H, W, C)
    valid = (target != IGNORE_LABEL).astype(jnp.float32)          # (N, H, W)
    total = 0.0
    for i in range(C):
        p = pred[:, i].reshape(N, -1)
        t = onehot[..., i].reshape(N, -1)
        v = valid.reshape(N, -1)
        num = jnp.sum(p * t * v, axis=1) * 2 + SMOOTH
        den = jnp.sum(p ** EXPONENT * v + t ** EXPONENT * v, axis=1) + max(SMOOTH, 1e-5)
        total += 1.0 - jnp.mean(num / den)
    return total / C


if __name__ == "__main__":
    key = jax.random.PRNGKey(0)

    def check(score, target, atol=2e-3):
        out = dice_loss(score, target)
        jax.block_until_ready(out)
        ref = _dice_loss_ref(score, target)
        assert bool(jnp.isfinite(out)), out
        # Tolerance loosened slightly for pl.reciprocal(approx=True) in softmax.
        assert jnp.allclose(out, ref, atol=atol, rtol=1e-3), (out, ref)
        return out

    # 1) Basic case: N=2, C=4, 16x16 (single spatial block, full-dim tile).
    k1, k2, key = jax.random.split(key, 3)
    score = jax.random.normal(k1, (2, 4, 16, 16), dtype=jnp.float32)
    target = jax.random.randint(k2, (2, 16, 16), -1, 4, dtype=jnp.int32)
    check(score, target)

    # 2) Low-resolution score -> bilinear upsample path (TruFor's usual path).
    k3, key = jax.random.split(key)
    score_low = jax.random.normal(k3, (2, 4, 4, 4), dtype=jnp.float32)
    check(score_low, target)

    # 3) Tiled case: R=40 rows, TR=32 -> 2-way split, partial (masked) last
    #    row-block, int8 label stream; also exercised with a bf16 score.
    k4, k5, key = jax.random.split(key, 3)
    score3 = jax.random.normal(k4, (2, 4, 64, 80), dtype=jnp.float32)
    target3 = jax.random.randint(k5, (2, 64, 80), -1, 4, dtype=jnp.int32)
    check(score3, target3)
    check(score3.astype(jnp.bfloat16), target3, atol=5e-3)

    # 4) H*W not a multiple of 128 -> small lane-pad path, odd C.
    k6, k7, key = jax.random.split(key, 3)
    score4 = jax.random.normal(k6, (2, 3, 30, 30), dtype=jnp.float32)
    target4 = jax.random.randint(k7, (2, 30, 30), -1, 3, dtype=jnp.int32)
    check(score4, target4)

    print("KERNEL_OK")
</pallas_src>

<mosaic_0001>
module attributes {stable_mosaic.version = 11 : i64} {
  func.func @_dice_kernel(%arg0: i32, %arg1: i32, %arg2: i32, %arg3: memref<1x4x2x128xf32, #tpu.memory_space<vmem>>, %arg4: memref<1x1x2x128xi32, #tpu.memory_space<vmem>>, %arg5: memref<1x1x4x128xf32, #tpu.memory_space<vmem>>, %arg6: memref<1x1x4x128xf32, #tpu.memory_space<vmem>>) attributes {dimension_semantics = [#tpu.dimension_semantics<parallel>, #tpu.dimension_semantics<parallel>, #tpu.dimension_semantics<arbitrary>], iteration_bounds = array<i64: 2, 1, 1>, scalar_prefetch = 0 : i64, scratch_operands = 0 : i64, tpu.core_type = #tpu.core_type<tc>, window_params = [{transform_indices = @transform_0, window_bounds = array<i64: 1, 4, 2, 128>}, {transform_indices = @transform_1, window_bounds = array<i64: 1, 1, 2, 128>}, {transform_indices = @transform_2, window_bounds = array<i64: 1, 1, 4, 128>}, {transform_indices = @transform_3, window_bounds = array<i64: 1, 1, 4, 128>}]} {
    %c0_i32 = arith.constant 0 : i32
    %0 = arith.cmpi eq, %arg2, %c0_i32 : i32
    %1 = arith.extui %0 : i1 to i32
    %c0_i32_0 = arith.constant 0 : i32
    %2 = arith.cmpi ne, %1, %c0_i32_0 : i32
    scf.if %2 {
      %cst_69 = arith.constant 0.000000e+00 : f32
      %130 = vector.broadcast %cst_69 : f32 to vector<1x1x4x128xf32>
      %c0_70 = arith.constant 0 : index
      %c0_71 = arith.constant 0 : index
      %c0_72 = arith.constant 0 : index
      %c0_73 = arith.constant 0 : index
      %131 = vector.load %arg5[%c0_70, %c0_71, %c0_72, %c0_73] : memref<1x1x4x128xf32, #tpu.memory_space<vmem>>, vector<1x1x4x128xf32>
      tpu.vector_store %arg5[%c0_70, %c0_71, %c0_72, %c0_73], %130 {strides = array<i32>} : memref<1x1x4x128xf32, #tpu.memory_space<vmem>>, vector<1x1x4x128xf32>,
      %cst_74 = arith.constant 0.000000e+00 : f32
      %132 = vector.broadcast %cst_74 : f32 to vector<1x1x4x128xf32>
      %c0_75 = arith.constant 0 : index
      %c0_76 = arith.constant 0 : index
      %c0_77 = arith.constant 0 : index
      %c0_78 = arith.constant 0 : index
      %133 = vector.load %arg6[%c0_75, %c0_76, %c0_77, %c0_78] : memref<1x1x4x128xf32, #tpu.memory_space<vmem>>, vector<1x1x4x128xf32>
      tpu.vector_store %arg6[%c0_75, %c0_76, %c0_77, %c0_78], %132 {strides = array<i32>} : memref<1x1x4x128xf32, #tpu.memory_space<vmem>>, vector<1x1x4x128xf32>,
    } else {
    }
    %c1_i32 = arith.constant 1 : i32
    %3 = arith.muli %arg1, %c1_i32 : i32
    %4 = arith.addi %3, %arg2 : i32
    %c2_i32 = arith.constant 2 : i32
    %5 = arith.muli %4, %c2_i32 : i32
    %6 = tpu.iota {dimensions = array<i32: 0>} : vector<2x128xi32>
    %7 = vector.broadcast %5 : i32 to vector<2x128xi32>
    %8 = arith.addi %7, %6 : vector<2x128xi32>
    %c2_i32_1 = arith.constant 2 : i32
    %9 = vector.broadcast %c2_i32_1 : i32 to vector<2x128xi32>
    %10 = arith.cmpi slt, %8, %9 : vector<2x128xi32>
    %c0 = arith.constant 0 : index
    %c0_2 = arith.constant 0 : index
    %c0_3 = arith.constant 0 : index
    %c0_4 = arith.constant 0 : index
    %11 = vector.load %arg4[%c0, %c0_2, %c0_3, %c0_4] : memref<1x1x2x128xi32, #tpu.memory_space<vmem>>, vector<1x1x2x128xi32>
    %12 = vector.shape_cast %11 : vector<1x1x2x128xi32> to vector<2x128xi32>
    %c-1_i32 = arith.constant -1 : i32
    %13 = vector.broadcast %c-1_i32 : i32 to vector<2x128xi32>
    %14 = arith.select %10, %12, %13 : vector<2x128xi1>, vector<2x128xi32>
    %c-1_i32_5 = arith.constant -1 : i32
    %15 = vector.broadcast %c-1_i32_5 : i32 to vector<2x128xi32>
    %16 = arith.cmpi ne, %14, %15 : vector<2x128xi32>
    %17 = arith.extui %16 : vector<2x128xi1> to vector<2x128xi32>
    %18 = arith.sitofp %17 : vector<2x128xi32> to vector<2x128xf32>
    %c0_6 = arith.constant 0 : index
    %c0_7 = arith.constant 0 : index
    %c0_8 = arith.constant 0 : index
    %c0_9 = arith.constant 0 : index
    %19 = vector.load %arg3[%c0_6, %c0_7, %c0_8, %c0_9] : memref<1x4x2x128xf32, #tpu.memory_space<vmem>>, vector<1x1x2x128xf32>
    %20 = vector.shape_cast %19 : vector<1x1x2x128xf32> to vector<2x128xf32>
    %c0_10 = arith.constant 0 : index
    %c1 = arith.constant 1 : index
    %c0_11 = arith.constant 0 : index
    %c0_12 = arith.constant 0 : index
    %21 = vector.load %arg3[%c0_10, %c1, %c0_11, %c0_12] : memref<1x4x2x128xf32, #tpu.memory_space<vmem>>, vector<1x1x2x128xf32>
    %22 = vector.shape_cast %21 : vector<1x1x2x128xf32> to vector<2x128xf32>
    %23 = arith.maximumf %20, %22 : vector<2x128xf32>
    %c0_13 = arith.constant 0 : index
    %c2 = arith.constant 2 : index
    %c0_14 = arith.constant 0 : index
    %c0_15 = arith.constant 0 : index
    %24 = vector.load %arg3[%c0_13, %c2, %c0_14, %c0_15] : memref<1x4x2x128xf32, #tpu.memory_space<vmem>>, vector<1x1x2x128xf32>
    %25 = vector.shape_cast %24 : vector<1x1x2x128xf32> to vector<2x128xf32>
    %26 = arith.maximumf %23, %25 : vector<2x128xf32>
    %c0_16 = arith.constant 0 : index
    %c3 = arith.constant 3 : index
    %c0_17 = arith.constant 0 : index
    %c0_18 = arith.constant 0 : index
    %27 = vector.load %arg3[%c0_16, %c3, %c0_17, %c0_18] : memref<1x4x2x128xf32, #tpu.memory_space<vmem>>, vector<1x1x2x128xf32>
    %28 = vector.shape_cast %27 : vector<1x1x2x128xf32> to vector<2x128xf32>
    %29 = arith.maximumf %26, %28 : vector<2x128xf32>
    %c0_19 = arith.constant 0 : index
    %c0_20 = arith.constant 0 : index
    %c0_21 = arith.constant 0 : index
    %c0_22 = arith.constant 0 : index
    %30 = vector.load %arg3[%c0_19, %c0_20, %c0_21, %c0_22] : memref<1x4x2x128xf32, #tpu.memory_space<vmem>>, vector<1x1x2x128xf32>
    %31 = vector.shape_cast %30 : vector<1x1x2x128xf32> to vector<2x128xf32>
    %32 = arith.subf %31, %29 : vector<2x128xf32>
    %33 = math.exp %32 : vector<2x128xf32>
    %cst = arith.constant 1.000000e+00 : f32
    %34 = vector.broadcast %cst : f32 to vector<2x128xf32>
    %35 = arith.select %10, %33, %34 : vector<2x128xi1>, vector<2x128xf32>
    %c0_23 = arith.constant 0 : index
    %c1_24 = arith.constant 1 : index
    %c0_25 = arith.constant 0 : index
    %c0_26 = arith.constant 0 : index
    %36 = vector.load %arg3[%c0_23, %c1_24, %c0_25, %c0_26] : memref<1x4x2x128xf32, #tpu.memory_space<vmem>>, vector<1x1x2x128xf32>
    %37 = vector.shape_cast %36 : vector<1x1x2x128xf32> to vector<2x128xf32>
    %38 = arith.subf %37, %29 : vector<2x128xf32>
    %39 = math.exp %38 : vector<2x128xf32>
    %cst_27 = arith.constant 1.000000e+00 : f32
    %40 = vector.broadcast %cst_27 : f32 to vector<2x128xf32>
    %41 = arith.select %10, %39, %40 : vector<2x128xi1>, vector<2x128xf32>
    %42 = arith.addf %35, %41 : vector<2x128xf32>
    %c0_28 = arith.constant 0 : index
    %c2_29 = arith.constant 2 : index
    %c0_30 = arith.constant 0 : index
    %c0_31 = arith.constant 0 : index
    %43 = vector.load %arg3[%c0_28, %c2_29, %c0_30, %c0_31] : memref<1x4x2x128xf32, #tpu.memory_space<vmem>>, vector<1x1x2x128xf32>
    %44 = vector.shape_cast %43 : vector<1x1x2x128xf32> to vector<2x128xf32>
    %45 = arith.subf %44, %29 : vector<2x128xf32>
    %46 = math.exp %45 : vector<2x128xf32>
    %cst_32 = arith.constant 1.000000e+00 : f32
    %47 = vector.broadcast %cst_32 : f32 to vector<2x128xf32>
    %48 = arith.select %10, %46, %47 : vector<2x128xi1>, vector<2x128xf32>
    %49 = arith.addf %42, %48 : vector<2x128xf32>
    %c0_33 = arith.constant 0 : index
    %c3_34 = arith.constant 3 : index
    %c0_35 = arith.constant 0 : index
    %c0_36 = arith.constant 0 : index
    %50 = vector.load %arg3[%c0_33, %c3_34, %c0_35, %c0_36] : memref<1x4x2x128xf32, #tpu.memory_space<vmem>>, vector<1x1x2x128xf32>
    %51 = vector.shape_cast %50 : vector<1x1x2x128xf32> to vector<2x128xf32>
    %52 = arith.subf %51, %29 : vector<2x128xf32>
    %53 = math.exp %52 : vector<2x128xf32>
    %cst_37 = arith.constant 1.000000e+00 : f32
    %54 = vector.broadcast %cst_37 : f32 to vector<2x128xf32>
    %55 = arith.select %10, %53, %54 : vector<2x128xi1>, vector<2x128xf32>
    %56 = arith.addf %49, %55 : vector<2x128xf32>
    %57 = tpu.reciprocal %56 {approx = true} : vector<2x128xf32> -> vector<2x128xf32>
    %58 = arith.mulf %57, %57 : vector<2x128xf32>
    %59 = arith.mulf %58, %18 : vector<2x128xf32>
    %c0_i32_38 = arith.constant 0 : i32
    %60 = vector.broadcast %c0_i32_38 : i32 to vector<2x128xi32>
    %61 = arith.cmpi eq, %14, %60 : vector<2x128xi32>
    %62 = arith.mulf %35, %57 : vector<2x128xf32>
    %cst_39 = arith.constant 0.000000e+00 : f32
    %63 = vector.broadcast %cst_39 : f32 to vector<2x128xf32>
    %64 = arith.select %61, %62, %63 : vector<2x128xi1>, vector<2x128xf32>
    %cst_40 = arith.constant dense<0.000000e+00> : vector<128xf32>
    %65 = vector.multi_reduction <add>, %64, %cst_40 [0] : vector<2x128xf32> to vector<128xf32>
    %66 = vector.shape_cast %65 : vector<128xf32> to vector<1x128xf32>
    %67 = arith.mulf %35, %35 : vector<2x128xf32>
    %68 = arith.mulf %67, %59 : vector<2x128xf32>
    %69 = arith.extui %61 : vector<2x128xi1> to vector<2x128xi32>
    %70 = arith.sitofp %69 : vector<2x128xi32> to vector<2x128xf32>
    %71 = arith.addf %68, %70 : vector<2x128xf32>
    %cst_41 = arith.constant dense<0.000000e+00> : vector<128xf32>
    %72 = vector.multi_reduction <add>, %71, %cst_41 [0] : vector<2x128xf32> to vector<128xf32>
    %73 = vector.shape_cast %72 : vector<128xf32> to vector<1x128xf32>
    %c1_i32_42 = arith.constant 1 : i32
    %74 = vector.broadcast %c1_i32_42 : i32 to vector<2x128xi32>
    %75 = arith.cmpi eq, %14, %74 : vector<2x128xi32>
    %76 = arith.mulf %41, %57 : vector<2x128xf32>
    %cst_43 = arith.constant 0.000000e+00 : f32
    %77 = vector.broadcast %cst_43 : f32 to vector<2x128xf32>
    %78 = arith.select %75, %76, %77 : vector<2x128xi1>, vector<2x128xf32>
    %cst_44 = arith.constant dense<0.000000e+00> : vector<128xf32>
    %79 = vector.multi_reduction <add>, %78, %cst_44 [0] : vector<2x128xf32> to vector<128xf32>
    %80 = vector.shape_cast %79 : vector<128xf32> to vector<1x128xf32>
    %81 = arith.mulf %41, %41 : vector<2x128xf32>
    %82 = arith.mulf %81, %59 : vector<2x128xf32>
    %83 = arith.extui %75 : vector<2x128xi1> to vector<2x128xi32>
    %84 = arith.sitofp %83 : vector<2x128xi32> to vector<2x128xf32>
    %85 = arith.addf %82, %84 : vector<2x128xf32>
    %cst_45 = arith.constant dense<0.000000e+00> : vector<128xf32>
    %86 = vector.multi_reduction <add>, %85, %cst_45 [0] : vector<2x128xf32> to vector<128xf32>
    %87 = vector.shape_cast %86 : vector<128xf32> to vector<1x128xf32>
    %c2_i32_46 = arith.constant 2 : i32
    %88 = vector.broadcast %c2_i32_46 : i32 to vector<2x128xi32>
    %89 = arith.cmpi eq, %14, %88 : vector<2x128xi32>
    %90 = arith.mulf %48, %57 : vector<2x128xf32>
    %cst_47 = arith.constant 0.000000e+00 : f32
    %91 = vector.broadcast %cst_47 : f32 to vector<2x128xf32>
    %92 = arith.select %89, %90, %91 : vector<2x128xi1>, vector<2x128xf32>
    %cst_48 = arith.constant dense<0.000000e+00> : vector<128xf32>
    %93 = vector.multi_reduction <add>, %92, %cst_48 [0] : vector<2x128xf32> to vector<128xf32>
    %94 = vector.shape_cast %93 : vector<128xf32> to vector<1x128xf32>
    %95 = arith.mulf %48, %48 : vector<2x128xf32>
    %96 = arith.mulf %95, %59 : vector<2x128xf32>
    %97 = arith.extui %89 : vector<2x128xi1> to vector<2x128xi32>
    %98 = arith.sitofp %97 : vector<2x128xi32> to vector<2x128xf32>
    %99 = arith.addf %96, %98 : vector<2x128xf32>
    %cst_49 = arith.constant dense<0.000000e+00> : vector<128xf32>
    %100 = vector.multi_reduction <add>, %99, %cst_49 [0] : vector<2x128xf32> to vector<128xf32>
    %101 = vector.shape_cast %100 : vector<128xf32> to vector<1x128xf32>
    %c3_i32 = arith.constant 3 : i32
    %102 = vector.broadcast %c3_i32 : i32 to vector<2x128xi32>
    %103 = arith.cmpi eq, %14, %102 : vector<2x128xi32>
    %104 = arith.mulf %55, %57 : vector<2x128xf32>
    %cst_50 = arith.constant 0.000000e+00 : f32
    %105 = vector.broadcast %cst_50 : f32 to vector<2x128xf32>
    %106 = arith.select %103, %104, %105 : vector<2x128xi1>, vector<2x128xf32>
    %cst_51 = arith.constant dense<0.000000e+00> : vector<128xf32>
    %107 = vector.multi_reduction <add>, %106, %cst_51 [0] : vector<2x128xf32> to vector<128xf32>
    %108 = vector.shape_cast %107 : vector<128xf32> to vector<1x128xf32>
    %109 = arith.mulf %55, %55 : vector<2x128xf32>
    %110 = arith.mulf %109, %59 : vector<2x128xf32>
    %111 = arith.extui %103 : vector<2x128xi1> to vector<2x128xi32>
    %112 = arith.sitofp %111 : vector<2x128xi32> to vector<2x128xf32>
    %113 = arith.addf %110, %112 : vector<2x128xf32>
    %cst_52 = arith.constant dense<0.000000e+00> : vector<128xf32>
    %114 = vector.multi_reduction <add>, %113, %cst_52 [0] : vector<2x128xf32> to vector<128xf32>
    %115 = vector.shape_cast %114 : vector<128xf32> to vector<1x128xf32>
    %c0_53 = arith.constant 0 : index
    %c0_54 = arith.constant 0 : index
    %c0_55 = arith.constant 0 : index
    %c0_56 = arith.constant 0 : index
    %116 = vector.load %arg5[%c0_53, %c0_54, %c0_55, %c0_56] : memref<1x1x4x128xf32, #tpu.memory_space<vmem>>, vector<1x1x4x128xf32>
    %117 = vector.shape_cast %116 : vector<1x1x4x128xf32> to vector<4x128xf32>
    %118 = tpu.concatenate %66, %80, %94, %108 in 0 : vector<1x128xf32>, vector<1x128xf32>, vector<1x128xf32>, vector<1x128xf32> -> vector<4x128xf32>
    %119 = arith.addf %117, %118 : vector<4x128xf32>
    %c0_57 = arith.constant 0 : index
    %c0_58 = arith.constant 0 : index
    %c0_59 = arith.constant 0 : index
    %c0_60 = arith.constant 0 : index
    %120 = vector.load %arg5[%c0_57, %c0_58, %c0_59, %c0_60] : memref<1x1x4x128xf32, #tpu.memory_space<vmem>>, vector<1x1x4x128xf32>
    %121 = vector.shape_cast %120 : vector<1x1x4x128xf32> to vector<4x128xf32>
    %122 = vector.shape_cast %119 : vector<4x128xf32> to vector<1x1x4x128xf32>
    tpu.vector_store %arg5[%c0_57, %c0_58, %c0_59, %c0_60], %122 {strides = array<i32>} : memref<1x1x4x128xf32, #tpu.memory_space<vmem>>, vector<1x1x4x128xf32>,
    %c0_61 = arith.constant 0 : index
    %c0_62 = arith.constant 0 : index
    %c0_63 = arith.constant 0 : index
    %c0_64 = arith.constant 0 : index
    %123 = vector.load %arg6[%c0_61, %c0_62, %c0_63, %c0_64] : memref<1x1x4x128xf32, #tpu.memory_space<vmem>>, vector<1x1x4x128xf32>
    %124 = vector.shape_cast %123 : vector<1x1x4x128xf32> to vector<4x128xf32>
    %125 = tpu.concatenate %73, %87, %101, %115 in 0 : vector<1x128xf32>, vector<1x128xf32>, vector<1x128xf32>, vector<1x128xf32> -> vector<4x128xf32>
    %126 = arith.addf %124, %125 : vector<4x128xf32>
    %c0_65 = arith.constant 0 : index
    %c0_66 = arith.constant 0 : index
    %c0_67 = arith.constant 0 : index
    %c0_68 = arith.constant 0 : index
    %127 = vector.load %arg6[%c0_65, %c0_66, %c0_67, %c0_68] : memref<1x1x4x128xf32, #tpu.memory_space<vmem>>, vector<1x1x4x128xf32>
    %128 = vector.shape_cast %127 : vector<1x1x4x128xf32> to vector<4x128xf32>
    %129 = vector.shape_cast %126 : vector<4x128xf32> to vector<1x1x4x128xf32>
    tpu.vector_store %arg6[%c0_65, %c0_66, %c0_67, %c0_68], %129 {strides = array<i32>} : memref<1x1x4x128xf32, #tpu.memory_space<vmem>>, vector<1x1x4x128xf32>,
    return
  }
  func.func @transform_0(%arg0: i32, %arg1: i32, %arg2: i32) -> (i32, i32, i32, i32) {
    %c1_i32 = arith.constant 1 : i32
    %0 = arith.muli %arg1, %c1_i32 : i32
    %1 = arith.addi %0, %arg2 : i32
    %c0_i32 = arith.constant 0 : i32
    %2 = arith.minsi %1, %c0_i32 : i32
    %c0_i32_0 = arith.constant 0 : i32
    %c0_i32_1 = arith.constant 0 : i32
    %c0_i32_2 = arith.constant 0 : i32
    return %arg0, %c0_i32_0, %2, %c0_i32_1 : i32, i32, i32, i32
  }
  func.func @transform_1(%arg0: i32, %arg1: i32, %arg2: i32) -> (i32, i32, i32, i32) {
    %c1_i32 = arith.constant 1 : i32
    %0 = arith.muli %arg1, %c1_i32 : i32
    %1 = arith.addi %0, %arg2 : i32
    %c0_i32 = arith.constant 0 : i32
    %2 = arith.minsi %1, %c0_i32 : i32
    %c0_i32_0 = arith.constant 0 : i32
    %c0_i32_1 = arith.constant 0 : i32
    %c0_i32_2 = arith.constant 0 : i32
    return %arg0, %c0_i32_0, %2, %c0_i32_1 : i32, i32, i32, i32
  }
  func.func @transform_2(%arg0: i32, %arg1: i32, %arg2: i32) -> (i32, i32, i32, i32) {
    %c0_i32 = arith.constant 0 : i32
    %c0_i32_0 = arith.constant 0 : i32
    %c0_i32_1 = arith.constant 0 : i32
    return %arg0, %arg1, %c0_i32, %c0_i32_0 : i32, i32, i32, i32
  }
  func.func @transform_3(%arg0: i32, %arg1: i32, %arg2: i32) -> (i32, i32, i32, i32) {
    %c0_i32 = arith.constant 0 : i32
    %c0_i32_0 = arith.constant 0 : i32
    %c0_i32_1 = arith.constant 0 : i32
    return %arg0, %arg1, %c0_i32, %c0_i32_0 : i32, i32, i32, i32
  }
}

</mosaic_0001>

<llo_original>
// kernel: dice_loss.1
$region0: #{dice_loss.1}
  #allocation0 [shape = 'u32[]', space=smem, size = 0x4, offset = 0x4, fixed_abs, tag = 'smem constant byte address 0x4 - core index']
  #allocation1 [shape = 'u32[72,128]{1,0:T(1,128)}', space=vmem, size = 0x9000, scoped, tag = 'internal scratch']
  %s0 = inlined_call_operand.vmem [shape: f32[2,4,2,128], index: 0, kind: input, shape index: {}]
  %s1 = inlined_call_operand.vmem [shape: s32[2,1,2,128], index: 1, kind: input, shape index: {}]
  %s2 = inlined_call_operand.vmem [shape: f32[2,1,4,128], index: 2, kind: output, shape index: {0}]
  %s3 = inlined_call_operand.vmem [shape: f32[2,1,4,128], index: 3, kind: output, shape index: {1}]
  %4 = xla_tuple %s2, %s3
  %s5 = sld [smem:[#allocation0]]
  $region53: #{dice_loss.1} parent=0
    _
  %s7 = ssub.s32 1, %s5
  %s8 = scalar_select 0, %s7, %s5
  loop: start=0, step=1, limit=4
  $region2: #{dice_loss.1} parent=0 // loop_pre_header
    _
  $region3: #{dice_loss.1} parent=0 // loop_header
    %s10 = sphi 0, %s14
    %p11 = scmp.ge.s32.totalorder %s10, 4
    %s17 = sphi 0, %s36
    %s18 = sphi 0, %s32
    %s19 = sphi 0, %s28
    %s20 = sphi 0, %s17
    %s21 = sphi 0, %s18
    %s22 = sphi 0, %s19
    %s23 = sphi 0, %s20
    %s24 = sphi 0, %s21
    %s25 = sphi 0, %s22
    %s47 = sphi 0, %s49
    %s50 = sphi 0, %s47
    %s51 = sphi 0, %s50
    %s67 = sphi 0, %s51
    %s81 = sphi 0, %s83
    %s84 = sphi 0, %s81
    %s85 = sphi 0, %s84
    %s101 = sphi 0, %s85
    %s109 = sphi 0, %s111
    %s112 = sphi 0, %s109
    %s113 = sphi 0, %s112
    %s129 = sphi 0, %s113
    %s137 = sphi 0, %s139
    %s140 = sphi 0, %s137
    %s141 = sphi 0, %s140
    %s157 = sphi 0, %s141
  $region4: #{dice_loss.1} parent=0 // loop_header_branch
    %13 = sbr.rel (%p11) target = $region8
  $region5: #{dice_loss.1} parent=0 // loop_body
    %s15 = ssub.s32 %s10, 1
    %s16 = ssub.s32 %s10, 2
    %s26 = sadd.s32 1, %s19
    %p27 = scmp.ge.s32.totalorder %s26, 1
    %s28 = scalar_select %p27, 0, %s26
    %s29 = sadd.s32 1, %s18
    %s30 = scalar_select %p27, %s29, %s18
    %p31 = scmp.ge.s32.totalorder %s30, 1
    %s32 = scalar_select %p31, 0, %s30
    %s33 = sadd.s32 1, %s17
    %s34 = scalar_select %p31, %s33, %s17
    %p35 = scmp.ge.s32.totalorder %s34, 2
    %s36 = scalar_select %p35, 0, %s34
    %s37 = sadd.s32 %s18, %s19
    %p38 = scmp.lt.s32.totalorder %s37, 0
    %s39 = scalar_select %p38, %s37, 0
    %s40 = sadd.s32 %s32, %s28
    %p41 = scmp.lt.s32.totalorder %s40, 0
    %s42 = scalar_select %p41, %s40, 0
    %s43 = ssub.s32 %s17, %s36
    %s44 = ssub.s32 %s39, %s42
    %s45 = sor.u32 %s43, %s44
    %p46 = scmp.eq.s32.totalorder %s45, 0
    %s48 = sadd.s32 %s47, 1
    %s49 = scalar_select %p46, %s47, %s48
    %p52 = pneg %p46
    %p53 = scmp.eq.s32.totalorder %s10, 1
    %p54 = por %p52, %p53
    %p55 = scmp.ne.s32.totalorder %s47, %s50
    %p56 = scmp.eq.s32.totalorder %s10, 0
    %p57 = por %p55, %p56
    %p58 = scmp.ne.s32.totalorder %s47, %s50
    %p59 = scmp.eq.s32.totalorder %s15, 1
    %p60 = por %p58, %p59
    %p61 = scmp.ne.s32.totalorder %s50, %s51
    %p62 = scmp.eq.s32.totalorder %s15, 0
    %p63 = por %p61, %p62
    %p64 = scmp.ne.s32.totalorder %s50, %s51
    %p65 = scmp.eq.s32.totalorder %s16, 1
    %p66 = por %p64, %p65
    %p68 = scmp.ne.s32.totalorder %s51, %s67
    %p69 = scmp.eq.s32.totalorder %s16, 0
    %p70 = por %p68, %p69
    %s71 = sadd.s32 %s18, %s19
    %p72 = scmp.lt.s32.totalorder %s71, 0
    %s73 = scalar_select %p72, %s71, 0
    %s74 = sadd.s32 %s32, %s28
    %p75 = scmp.lt.s32.totalorder %s74, 0
    %s76 = scalar_select %p75, %s74, 0
    %s77 = ssub.s32 %s17, %s36
    %s78 = ssub.s32 %s73, %s76
    %s79 = sor.u32 %s77, %s78
    %p80 = scmp.eq.s32.totalorder %s79, 0
    %s82 = sadd.s32 %s81, 1
    %s83 = scalar_select %p80, %s81, %s82
    %p86 = pneg %p80
    %p87 = scmp.eq.s32.totalorder %s10, 1
    %p88 = por %p86, %p87
    %p89 = scmp.ne.s32.totalorder %s81, %s84
    %p90 = scmp.eq.s32.totalorder %s10, 0
    %p91 = por %p89, %p90
    %p92 = scmp.ne.s32.totalorder %s81, %s84
    %p93 = scmp.eq.s32.totalorder %s15, 1
    %p94 = por %p92, %p93
    %p95 = scmp.ne.s32.totalorder %s84, %s85
    %p96 = scmp.eq.s32.totalorder %s15, 0
    %p97 = por %p95, %p96
    %p98 = scmp.ne.s32.totalorder %s84, %s85
    %p99 = scmp.eq.s32.totalorder %s16, 1
    %p100 = por %p98, %p99
    %p102 = scmp.ne.s32.totalorder %s85, %s101
    %p103 = scmp.eq.s32.totalorder %s16, 0
    %p104 = por %p102, %p103
    %s105 = ssub.s32 %s17, %s36
    %s106 = ssub.s32 %s18, %s32
    %s107 = sor.u32 %s105, %s106
    %p108 = scmp.eq.s32.totalorder %s107, 0
    %s110 = sadd.s32 %s109, 1
    %s111 = scalar_select %p108, %s109, %s110
    %p114 = pneg %p108
    %p115 = scmp.eq.s32.totalorder %s10, 1
    %p116 = por %p114, %p115
    %p117 = scmp.ne.s32.totalorder %s109, %s112
    %p118 = scmp.eq.s32.totalorder %s10, 0
    %p119 = por %p117, %p118
    %p120 = scmp.ne.s32.totalorder %s109, %s112
    %p121 = scmp.eq.s32.totalorder %s15, 1
    %p122 = por %p120, %p121
    %p123 = scmp.ne.s32.totalorder %s112, %s113
    %p124 = scmp.eq.s32.totalorder %s15, 0
    %p125 = por %p123, %p124
    %p126 = scmp.ne.s32.totalorder %s112, %s113
    %p127 = scmp.eq.s32.totalorder %s16, 1
    %p128 = por %p126, %p127
    %p130 = scmp.ne.s32.totalorder %s113, %s129
    %p131 = scmp.eq.s32.totalorder %s16, 0
    %p132 = por %p130, %p131
    %s133 = ssub.s32 %s17, %s36
    %s134 = ssub.s32 %s18, %s32
    %s135 = sor.u32 %s133, %s134
    %p136 = scmp.eq.s32.totalorder %s135, 0
    %s138 = sadd.s32 %s137, 1
    %s139 = scalar_select %p136, %s137, %s138
    %p142 = pneg %p136
    %p143 = scmp.eq.s32.totalorder %s10, 1
    %p144 = por %p142, %p143
    %p145 = scmp.ne.s32.totalorder %s137, %s140
    %p146 = scmp.eq.s32.totalorder %s10, 0
    %p147 = por %p145, %p146
    %p148 = scmp.ne.s32.totalorder %s137, %s140
    %p149 = scmp.eq.s32.totalorder %s15, 1
    %p150 = por %p148, %p149
    %p151 = scmp.ne.s32.totalorder %s140, %s141
    %p152 = scmp.eq.s32.totalorder %s15, 0
    %p153 = por %p151, %p152
    %p154 = scmp.ne.s32.totalorder %s140, %s141
    %p155 = scmp.eq.s32.totalorder %s16, 1
    %p156 = por %p154, %p155
    %p158 = scmp.ne.s32.totalorder %s141, %s157
    %p159 = scmp.eq.s32.totalorder %s16, 0
    %p160 = por %p158, %p159
    %p161 = scmp.le.s32.totalorder 1, %s10
    %p162 = scmp.lt.s32.totalorder %s10, 3
    %p163 = pnand %p161, %p162
    %p164 = pneg %p163
    // Predicated region
    $region9: #{dice_loss.1} parent=5 // pred_check
      _
    $region10: #{dice_loss.1} parent=5 // pred_check_branch
      %166 = sbr.rel (%p163) target = $region12
    $region11: #{dice_loss.1} parent=5 // pred_region
      %s167 = ssub.s32 %s10, 1
    $region12: #{dice_loss.1} parent=5 // pred_fallthru
      _
    %p168 = scmp.lt.s32.totalorder %s10, 2
    // Predicated region
    $region13: #{dice_loss.1} parent=5 // pred_check
      %p169 = pneg %p168
    $region14: #{dice_loss.1} parent=5 // pred_check_branch
      %171 = sbr.rel (%p169) target = $region16
    $region15: #{dice_loss.1} parent=5 // pred_region
      // Predicated region
      $region17: #{dice_loss.1} parent=15 // pred_check
        %p172 = pneg %p57
      $region18: #{dice_loss.1} parent=15 // pred_check_branch
        %174 = sbr.rel (%p172) target = $region20
      $region19: #{dice_loss.1} parent=15 // pred_region
        %s175 = sadd.s32 %s18, %s19
        %p176 = scmp.lt.s32.totalorder %s175, 0
        %s177 = scalar_select %p176, %s175, 0
        %p178 = scmp.lt.s32.totalorder %s17, 1
        %s179 = scalar_select %p178, %s17, 1
        %p180 = scmp.lt.s32.totalorder %s177, 0
        %s181 = scalar_select %p180, %s177, 0
        %s182 = smul.addr %s179, 4
        %s183 = sadd.s32 %s181, %s182
        %s184 = smul.addr %s183, 2
        %s185 = scalar_lea.vmem %s0, %s184
        %s186 = sadd.s32 %s18, %s19
        %p187 = scmp.lt.s32.totalorder %s186, 0
        %s188 = scalar_select %p187, %s186, 0
      $region20: #{dice_loss.1} parent=15 // pred_fallthru
        _
      // Predicated region
      $region21: #{dice_loss.1} parent=15 // pred_check
        %p189 = pneg %p91
      $region22: #{dice_loss.1} parent=15 // pred_check_branch
        %191 = sbr.rel (%p189) target = $region24
      $region23: #{dice_loss.1} parent=15 // pred_region
        %s192 = sadd.s32 %s18, %s19
        %p193 = scmp.lt.s32.totalorder %s192, 0
        %s194 = scalar_select %p193, %s192, 0
        %p195 = scmp.lt.s32.totalorder %s17, 1
        %s196 = scalar_select %p195, %s17, 1
        %p197 = scmp.lt.s32.totalorder %s194, 0
        %s198 = scalar_select %p197, %s194, 0
        %s199 = sadd.s32 %s198, %s196
        %s200 = smul.addr %s199, 2
        %s201 = scalar_lea.vmem %s1, %s200
        %s202 = sadd.s32 %s18, %s19
        %p203 = scmp.lt.s32.totalorder %s202, 0
        %s204 = scalar_select %p203, %s202, 0
      $region24: #{dice_loss.1} parent=15 // pred_fallthru
        _
    $region16: #{dice_loss.1} parent=5 // pred_fallthru
      _
    %p205 = scmp.le.s32.totalorder 1, %s10
    %p206 = scmp.lt.s32.totalorder %s10, 3
    %p207 = pnand %p205, %p206
    %p208 = pneg %p207
    // Predicated region
    $region25: #{dice_loss.1} parent=5 // pred_check
      _
    $region26: #{dice_loss.1} parent=5 // pred_check_branch
      %210 = sbr.rel (%p207) target = $region28
    $region27: #{dice_loss.1} parent=5 // pred_region
      %s211 = ssub.s32 %s10, 1
      %s212 = sadd.s32 %s21, %s22
      %p213 = scmp.lt.s32.totalorder %s212, 0
      %s214 = scalar_select %p213, %s212, 0
      %p215 = scmp.lt.s32.totalorder %s20, 1
      %s216 = scalar_select %p215, %s20, 1
      %p217 = scmp.lt.s32.totalorder %s214, 0
      %s218 = scalar_select %p217, %s214, 0
      %s219 = smul.addr %s216, 4
      %s220 = sadd.s32 %s218, %s219
      %s221 = smul.addr %s220, 2
      %s222 = scalar_lea.vmem %s0, %s221
      %p223 = pneg %p63
      %p224 = pneg %p60
      %s225 = sadd.s32 %s21, %s22
      %p226 = scmp.lt.s32.totalorder %s225, 0
      %s227 = scalar_select %p226, %s225, 0
      %p228 = scmp.lt.s32.totalorder %s20, 1
      %s229 = scalar_select %p228, %s20, 1
      %p230 = scmp.lt.s32.totalorder %s227, 0
      %s231 = scalar_select %p230, %s227, 0
      %s232 = sadd.s32 %s231, %s229
      %s233 = smul.addr %s232, 2
      %s234 = scalar_lea.vmem %s1, %s233
      %p235 = pneg %p97
      %p236 = pneg %p94
      %p237 = pneg %p125
      %p238 = pneg %p122
      %p239 = scmp.lt.s32.totalorder %s20, 1
      %s240 = scalar_select %p239, %s20, 1
      %p241 = scmp.lt.s32.totalorder %s21, 0
      %s242 = scalar_select %p241, %s21, 0
      %s243 = sadd.s32 %s242, %s240
      %s244 = smul.addr %s243, 4
      %s245 = scalar_lea.vmem %s2, %s244
      %p246 = pneg %p153
      %p247 = pneg %p150
      %p248 = scmp.lt.s32.totalorder %s20, 1
      %s249 = scalar_select %p248, %s20, 1
      %p250 = scmp.lt.s32.totalorder %s21, 0
      %s251 = scalar_select %p250, %s21, 0
      %s252 = sadd.s32 %s251, %s249
      %s253 = smul.addr %s252, 4
      %s254 = scalar_lea.vmem %s3, %s253
      %s255 = sadd.s32 %s21, %s22
      %p256 = scmp.lt.s32.totalorder %s255, 0
      %s257 = scalar_select %p256, %s255, 0
      %p258 = scmp.lt.s32.totalorder %s20, 1
      %s259 = scalar_select %p258, %s20, 1
      %p260 = scmp.lt.s32.totalorder %s257, 0
      %s261 = scalar_select %p260, %s257, 0
      %s262 = smul.addr %s259, 4
      %s263 = sadd.s32 %s261, %s262
      %s264 = smul.addr %s263, 2
      %s265 = scalar_lea.vmem %s0, %s264
      %s266 = sadd.s32 %s21, %s22
      %p267 = scmp.lt.s32.totalorder %s266, 0
      %s268 = scalar_select %p267, %s266, 0
      %s269 = sadd.s32 %s21, %s22
      %p270 = scmp.lt.s32.totalorder %s269, 0
      %s271 = scalar_select %p270, %s269, 0
      %p272 = scmp.lt.s32.totalorder %s20, 1
      %s273 = scalar_select %p272, %s20, 1
      %p274 = scmp.lt.s32.totalorder %s271, 0
      %s275 = scalar_select %p274, %s271, 0
      %s276 = sadd.s32 %s275, %s273
      %s277 = smul.addr %s276, 2
      %s278 = scalar_lea.vmem %s1, %s277
      %s279 = sadd.s32 %s21, %s22
      %p280 = scmp.lt.s32.totalorder %s279, 0
      %s281 = scalar_select %p280, %s279, 0
      %p282 = scmp.lt.s32.totalorder %s20, 1
      %s283 = scalar_select %p282, %s20, 1
      %p284 = scmp.lt.s32.totalorder %s21, 0
      %s285 = scalar_select %p284, %s21, 0
      %s286 = sadd.s32 %s285, %s283
      %s287 = smul.addr %s286, 4
      %s288 = scalar_lea.vmem %s2, %s287
      %p289 = scmp.lt.s32.totalorder %s20, 1
      %s290 = scalar_select %p289, %s20, 1
      %p291 = scmp.lt.s32.totalorder %s21, 0
      %s292 = scalar_select %p291, %s21, 0
      %s293 = sadd.s32 %s292, %s290
      %s294 = smul.addr %s293, 4
      %s295 = scalar_lea.vmem %s3, %s294
      %p296 = scmp.eq.s32.totalorder %s22, 0
      // Predicated region
      $region29: #{dice_loss.1} parent=27 // pred_check
        %p297 = pneg %p296
      $region30: #{dice_loss.1} parent=27 // pred_check_branch
        %299 = sbr.rel (%p297) target = $region32
      $region31: #{dice_loss.1} parent=27 // pred_region
        %300 = vst [vmem:[%s288] sm:$0xf] 0.0
        %301 = vst [vmem:[%s295] sm:$0xf] 0.0
      $region32: #{dice_loss.1} parent=27 // pred_fallthru
        _
      %s302 = sadd.s32 %s21, %s22
      %s303 = smul.u32 %s302, 2
      %v304 = vlaneseq
      %v305 = vshrl.u32 %v304, 7
      %v306 = vstv %s303
      %v307 = vadd.s32 %v306, %v305
      %vm308 = vcmp.lt.s32.totalorder %v307, 2
      %v309 = vld [vmem:[%s278] sm:$0x3]
      %v310 = vsel %vm308, %v309, 4294967295
      %vm311 = vcmp.ne.s32.totalorder %v310, 4294967295
      %v312 = vsel %vm311, 1, 0
      %v313 = vcvt.s32.f32 %v312
      %v314 = vld [vmem:[%s265] sm:$0x3]
      %s315 = scalar_lea.vmem %s265, 2
      %v316 = vld [vmem:[%s315] sm:$0x3]
      %v317 = vmax.f32 %v314, %v316
      %s318 = scalar_lea.vmem %s265, 4
      %v319 = vld [vmem:[%s318] sm:$0x3]
      %v320 = vmax.f32 %v317, %v319
      %s321 = scalar_lea.vmem %s265, 6
      %v322 = vld [vmem:[%s321] sm:$0x3]
      %v323 = vmax.f32 %v320, %v322
      %v324 = vsub.f32 %v314, %v323
      %v325 = vmul.f32 %v324, 1.442695
      %v326 = vpow.pop %v325
      %v327 = vsel %vm308, %v326, 1.0
      %v328 = vsub.f32 %v316, %v323
      %v329 = vmul.f32 %v328, 1.442695
      %v330 = vpow.pop %v329
      %v331 = vsel %vm308, %v330, 1.0
      %v332 = vadd.f32 %v327, %v331
      %v333 = vsub.f32 %v319, %v323
      %v334 = vmul.f32 %v333, 1.442695
      %v335 = vpow.pop %v334
      %v336 = vsel %vm308, %v335, 1.0
      %v337 = vadd.f32 %v332, %v336
      %v338 = vsub.f32 %v322, %v323
      %v339 = vmul.f32 %v338, 1.442695
      %v340 = vpow.pop %v339
      %v341 = vsel %vm308, %v340, 1.0
      %v342 = vadd.f32 %v337, %v341
      %v343 = vrcp.pop %v342
      %v344 = vmul.f32 %v343, %v343
      %v345 = vmul.f32 %v344, %v313
      %vm346 = vcmp.eq.s32.totalorder %v310, 0
      %v347 = vmul.f32 %v327, %v343
      %v348 = vsel %vm346, %v347, 0.0
      %vm349 = vcmask 1041408
      %v350 = vsel %vm349, %v348, 0.0
      %v351 = vrot.slane %v350, 4
      %v352 = vadd.f32 %v350, %v351
      %v353 = vrot.slane %v352, 2
      %v354 = vadd.f32 %v352, %v353
      %v355 = vrot.slane %v354, 1
      %v356 = vadd.f32 %v354, %v355
      %v357 = vmul.f32 %v327, %v327
      %v358 = vmul.f32 %v357, %v345
      %v359 = vsel %vm346, 1, 0
      %v360 = vcvt.s32.f32 %v359
      %v361 = vadd.f32 %v358, %v360
      %v362 = vsel %vm349, %v361, 0.0
      %v363 = vrot.slane %v362, 4
      %v364 = vadd.f32 %v362, %v363
      %v365 = vrot.slane %v364, 2
      %v366 = vadd.f32 %v364, %v365
      %v367 = vrot.slane %v366, 1
      %v368 = vadd.f32 %v366, %v367
      %vm369 = vcmp.eq.s32.totalorder %v310, 1
      %v370 = vmul.f32 %v331, %v343
      %v371 = vsel %vm369, %v370, 0.0
      %v372 = vsel %vm349, %v371, 0.0
      %v373 = vrot.slane %v372, 4
      %v374 = vadd.f32 %v372, %v373
      %v375 = vrot.slane %v374, 2
      %v376 = vadd.f32 %v374, %v375
      %v377 = vrot.slane %v376, 1
      %v378 = vadd.f32 %v376, %v377
      %v379 = vmul.f32 %v331, %v331
      %v380 = vmul.f32 %v379, %v345
      %v381 = vsel %vm369, 1, 0
      %v382 = vcvt.s32.f32 %v381
      %v383 = vadd.f32 %v380, %v382
      %v384 = vsel %vm349, %v383, 0.0
      %v385 = vrot.slane %v384, 4
      %v386 = vadd.f32 %v384, %v385
      %v387 = vrot.slane %v386, 2
      %v388 = vadd.f32 %v386, %v387
      %v389 = vrot.slane %v388, 1
      %v390 = vadd.f32 %v388, %v389
      %vm391 = vcmp.eq.s32.totalorder %v310, 2
      %v392 = vmul.f32 %v336, %v343
      %v393 = vsel %vm391, %v392, 0.0
      %v394 = vsel %vm349, %v393, 0.0
      %v395 = vrot.slane %v394, 4
      %v396 = vadd.f32 %v394, %v395
      %v397 = vrot.slane %v396, 2
      %v398 = vadd.f32 %v396, %v397
      %v399 = vrot.slane %v398, 1
      %v400 = vadd.f32 %v398, %v399
      %v401 = vmul.f32 %v336, %v336
      %v402 = vmul.f32 %v401, %v345
      %v403 = vsel %vm391, 1, 0
      %v404 = vcvt.s32.f32 %v403
      %v405 = vadd.f32 %v402, %v404
      %v406 = vsel %vm349, %v405, 0.0
      %v407 = vrot.slane %v406, 4
      %v408 = vadd.f32 %v406, %v407
      %v409 = vrot.slane %v408, 2
      %v410 = vadd.f32 %v408, %v409
      %v411 = vrot.slane %v410, 1
      %v412 = vadd.f32 %v410, %v411
      %vm413 = vcmp.eq.s32.totalorder %v310, 3
      %v414 = vmul.f32 %v341, %v343
      %v415 = vsel %vm413, %v414, 0.0
      %v416 = vsel %vm349, %v415, 0.0
      %v417 = vrot.slane %v416, 4
      %v418 = vadd.f32 %v416, %v417
      %v419 = vrot.slane %v418, 2
      %v420 = vadd.f32 %v418, %v419
      %v421 = vrot.slane %v420, 1
      %v422 = vadd.f32 %v420, %v421
      %v423 = vmul.f32 %v341, %v341
      %v424 = vmul.f32 %v423, %v345
      %v425 = vsel %vm413, 1, 0
      %v426 = vcvt.s32.f32 %v425
      %v427 = vadd.f32 %v424, %v426
      %v428 = vsel %vm349, %v427, 0.0
      %v429 = vrot.slane %v428, 4
      %v430 = vadd.f32 %v428, %v429
      %v431 = vrot.slane %v430, 2
      %v432 = vadd.f32 %v430, %v431
      %v433 = vrot.slane %v432, 1
      %v434 = vadd.f32 %v432, %v433
      %v435 = vld [vmem:[%s288] sm:$0xf]
      %vm436 = vcmask 1040384
      %v437 = vsel %vm436, %v356, %v378
      %v438 = vsel %vm349, %v437, %v400
      %vm439 = vcmask 1042432
      %v440 = vsel %vm439, %v438, %v422
      %v441 = vadd.f32 %v435, %v440
      %442 = vst [vmem:[%s288] sm:$0xf] %v441
      %v443 = vld [vmem:[%s295] sm:$0xf]
      %v444 = vsel %vm436, %v368, %v390
      %v445 = vsel %vm349, %v444, %v412
      %v446 = vsel %vm439, %v445, %v434
      %v447 = vadd.f32 %v443, %v446
      %448 = vst [vmem:[%s295] sm:$0xf] %v447
      %p449 = scmp.lt.s32.totalorder %s20, 1
      %s450 = scalar_select %p449, %s20, 1
      %p451 = scmp.lt.s32.totalorder %s21, 0
      %s452 = scalar_select %p451, %s21, 0
      %s453 = sadd.s32 %s452, %s450
      %s454 = smul.addr %s453, 4
      %s455 = scalar_lea.vmem %s2, %s454
      %p456 = scmp.lt.s32.totalorder %s20, 1
      %s457 = scalar_select %p456, %s20, 1
      %p458 = scmp.lt.s32.totalorder %s21, 0
      %s459 = scalar_select %p458, %s21, 0
      %s460 = sadd.s32 %s459, %s457
      %s461 = smul.addr %s460, 4
      %s462 = scalar_lea.vmem %s3, %s461
      // Predicated region
      $region33: #{dice_loss.1} parent=27 // pred_check
        %p463 = pneg %p122
      $region34: #{dice_loss.1} parent=27 // pred_check_branch
        %465 = sbr.rel (%p463) target = $region36
      $region35: #{dice_loss.1} parent=27 // pred_region
        _
      $region36: #{dice_loss.1} parent=27 // pred_fallthru
        _
      // Predicated region
      $region37: #{dice_loss.1} parent=27 // pred_check
        %p466 = pneg %p150
      $region38: #{dice_loss.1} parent=27 // pred_check_branch
        %468 = sbr.rel (%p466) target = $region40
      $region39: #{dice_loss.1} parent=27 // pred_region
        _
      $region40: #{dice_loss.1} parent=27 // pred_fallthru
        _
    $region28: #{dice_loss.1} parent=5 // pred_fallthru
      _
    %p469 = scmp.le.s32.totalorder 2, %s10
    // Predicated region
    $region41: #{dice_loss.1} parent=5 // pred_check
      %p470 = pneg %p469
    $region42: #{dice_loss.1} parent=5 // pred_check_branch
      %472 = sbr.rel (%p470) target = $region44
    $region43: #{dice_loss.1} parent=5 // pred_region
      %s473 = ssub.s32 %s10, 2
      // Predicated region
      $region45: #{dice_loss.1} parent=43 // pred_check
        %p474 = pneg %p128
      $region46: #{dice_loss.1} parent=43 // pred_check_branch
        %476 = sbr.rel (%p474) target = $region48
      $region47: #{dice_loss.1} parent=43 // pred_region
        %p477 = scmp.lt.s32.totalorder %s23, 1
        %s478 = scalar_select %p477, %s23, 1
        %p479 = scmp.lt.s32.totalorder %s24, 0
        %s480 = scalar_select %p479, %s24, 0
        %s481 = sadd.s32 %s480, %s478
        %s482 = smul.addr %s481, 4
        %s483 = scalar_lea.vmem %s2, %s482
      $region48: #{dice_loss.1} parent=43 // pred_fallthru
        _
      // Predicated region
      $region49: #{dice_loss.1} parent=43 // pred_check
        %p484 = pneg %p156
      $region50: #{dice_loss.1} parent=43 // pred_check_branch
        %486 = sbr.rel (%p484) target = $region52
      $region51: #{dice_loss.1} parent=43 // pred_region
        %p487 = scmp.lt.s32.totalorder %s23, 1
        %s488 = scalar_select %p487, %s23, 1
        %p489 = scmp.lt.s32.totalorder %s24, 0
        %s490 = scalar_select %p489, %s24, 0
        %s491 = sadd.s32 %s490, %s488
        %s492 = smul.addr %s491, 4
        %s493 = scalar_lea.vmem %s3, %s492
      $region52: #{dice_loss.1} parent=43 // pred_fallthru
        _
    $region44: #{dice_loss.1} parent=5 // pred_fallthru
      _
  $region6: #{dice_loss.1} parent=0 // loop_footer
    %s14 = sadd.s32 1, %s10
  $region7: #{dice_loss.1} parent=0 // loop_footer_branch
    %9 = sbr.rel target = $region3
  $region8: #{dice_loss.1} parent=0 // loop_exit
    _

</llo_original>
